<compile_context>
chip_gen: v7x
topology: tpu7x:2x2x1
jax: 0.10.0
libtpu: 0.0.40
codegen_flags: <defaults>
</compile_context>

<pallas_src>
import math

import jax
import jax.numpy as jnp
from jax.experimental import pallas as pl
from jax.experimental.pallas import tpu as pltpu


def _fused_mlp_kernel(x_ref, w1_ref, b1_ref, w2_ref, b2_ref, o_ref,
                      h_acc, out_acc):
    """One (batch, hidden, d_in) grid step of  out = silu(x@W1+b1) @ W2 + b2."""
    j = pl.program_id(1)           # hidden tile index
    k = pl.program_id(2)           # d_in (layer-1 reduction) tile index
    nj = pl.num_programs(1)
    nk = pl.num_programs(2)

    @pl.when(jnp.logical_and(j == 0, k == 0))
    def _init_out():
        out_acc[...] = jnp.zeros_like(out_acc)

    @pl.when(k == 0)
    def _init_hidden():
        h_acc[...] = jnp.zeros_like(h_acc)

    # Layer 1 partial product for this (d_in, hidden) slab, f32 on the MXU.
    h_acc[...] += jnp.dot(x_ref[...], w1_ref[...],
                          preferred_element_type=jnp.float32)

    @pl.when(k == nk - 1)
    def _layer2():
        # Bias + SiLU on the fully K-reduced hidden slab.  exp and the
        # approximate reciprocal both run on the EUP slot (~free under MXU).
        h = h_acc[...] + b1_ref[...].astype(jnp.float32)
        a = h * pl.reciprocal(1.0 + jnp.exp(-h), approx=True)      # SiLU
        # Layer 2 partial product for this hidden slab; the hidden activation
        # never leaves VMEM.
        out_acc[...] += jnp.dot(a.astype(w2_ref.dtype), w2_ref[...],
                                preferred_element_type=jnp.float32)

        @pl.when(j == nj - 1)
        def _finalize():
            o_ref[...] = (out_acc[...]
                          + b2_ref[...].astype(jnp.float32)).astype(o_ref.dtype)


def _cdiv(a, b):
    return (a + b - 1) // b


def _round_up(a, b):
    return _cdiv(a, b) * b


def _vmem_budget():
    """Generation-aware usable-VMEM budget (bytes) + a 2-TensorCore hint."""
    try:
        cap = int(pltpu.get_tpu_info().vmem_capacity_bytes)
    except Exception:                      # unknown backend: assume smallest (v7x)
        cap = 64 << 20
    budget = min(int(cap * 0.85), cap - (8 << 20))
    # v7x: 64 MiB VMEM per TensorCore, 2 TCs/chip.  v5e/v6e: 128 MiB, 1 TC.
    two_cores = cap <= (80 << 20)
    return max(budget, 32 << 20), two_cores


def _pick_divisor_tile(dim, fits):
    """Largest tile dividing `dim` exactly: full dim, else a multiple of 128."""
    if fits(dim):
        return dim
    divs = [d for d in range(128, dim, 128) if dim % d == 0]
    for d in reversed(divs):
        if fits(d):
            return d
    return divs[0] if divs else dim


def _select_tiles(rows, d_in, hidden, d_out, in_itm, out_itm, budget, two_cores):
    sub = {1: 32, 2: 16}.get(in_itm, 8)        # min sublane multiple per dtype

    def fp(tb, tk, th):                        # double-buffer unless constant
        return (2 * tb * tk * in_itm           # x tile
                + 2 * tk * th * in_itm         # W1 tile
                + 2 * th * in_itm              # b1 tile
                + 2 * th * d_out * in_itm      # W2 tile
                + d_out * in_itm               # b2 (single-buffered)
                + 2 * tb * d_out * out_itm     # output tile
                + tb * th * 4                  # h_acc   (f32 scratch)
                + tb * d_out * 4)              # out_acc (f32 scratch)

    # Batch tile: MXU-friendly cap; larger on 128-MiB parts for more W1 reuse.
    tb_cap = 512 if budget > (96 << 20) else 256
    tb = min(_round_up(rows, sub), tb_cap)
    # v7x megacore: make sure the parallel batch axis has at least 2 tiles.
    if two_cores and rows > sub and _cdiv(rows, tb) < 2:
        tb = _round_up(_cdiv(rows, 2), sub)

    th = _pick_divisor_tile(hidden, lambda t: fp(tb, min(d_in, 256), t) <= budget)
    tk = _pick_divisor_tile(d_in, lambda t: fp(tb, t, th) <= budget)

    while fp(tb, tk, th) > budget and tb > sub:    # last resort: shrink batch
        tb = max(sub, _round_up(tb // 2, sub))

    return tb, tk, th, fp(tb, tk, th)


def mlp_forward(x, w1, b1, w2, b2, *, compute_dtype=None):
    """Fused Pallas MLP forward:  y = silu(x @ W1 + b1) @ W2 + b2.

    x : (..., d_in)
    w1: (d_in, hidden)   -- pre-transposed vs. PyTorch's (out, in) layout
    b1: (hidden,)
    w2: (hidden, d_out)
    b2: (d_out,)
    compute_dtype: optionally cast x/W1/W2 (e.g. jnp.bfloat16) for full MXU
        throughput; accumulation stays f32 either way.  None keeps the input
        dtype (exact parity with an f32 reference).
    """
    d_in, hidden = w1.shape
    d_out = w2.shape[1]
    assert x.shape[-1] == d_in and w2.shape[0] == hidden
    assert b1.shape == (hidden,) and b2.shape == (d_out,)

    out_dtype = x.dtype
    if compute_dtype is not None:
        x, w1, w2 = (a.astype(compute_dtype) for a in (x, w1, w2))

    lead = x.shape[:-1]
    rows = int(math.prod(lead)) if lead else 1
    x2 = x.reshape(rows, d_in)

    budget, two_cores = _vmem_budget()
    in_itm = jnp.dtype(x2.dtype).itemsize
    out_itm = jnp.dtype(out_dtype).itemsize
    tb, tk, th, fp_bytes = _select_tiles(rows, d_in, hidden, d_out,
                                         in_itm, out_itm, budget, two_cores)

    # Batch axis may be ragged (handled by Pallas; rows are independent);
    # the d_in / hidden tiles divide their dims exactly (reduction safety).
    grid = (_cdiv(rows, tb), hidden // th, d_in // tk)
    n_i, n_j, n_k = grid

    b1_2d = b1.reshape(1, hidden)
    b2_2d = b2.reshape(1, d_out)

    def spec(shape, imap, constant):
        # Grid-constant operands are DMA'd once -> single buffer saves VMEM.
        if constant:
            return pl.BlockSpec(shape, imap, pipeline_mode=pl.Buffered(1))
        return pl.BlockSpec(shape, imap)

    in_specs = [
        # x: index_map ignores j -> the tile stays resident across hidden tiles.
        spec((tb, tk), lambda i, j, k: (i, k), n_i == 1 and n_k == 1),
        # W1: batch-invariant -> no re-DMA across batch tiles.
        spec((tk, th), lambda i, j, k: (k, j), n_j == 1 and n_k == 1),
        spec((1, th), lambda i, j, k: (0, j), n_j == 1),
        spec((th, d_out), lambda i, j, k: (j, 0), n_j == 1),
        spec((1, d_out), lambda i, j, k: (0, 0), True),
    ]

    vmem_limit = int(min(budget, max(32 << 20, 3 * fp_bytes // 2 + (4 << 20))))

    kernel = pl.pallas_call(
        _fused_mlp_kernel,
        out_shape=jax.ShapeDtypeStruct((rows, d_out), out_dtype),
        grid_spec=pltpu.PrefetchScalarGridSpec(
            num_scalar_prefetch=0,
            grid=grid,
            in_specs=in_specs,
            out_specs=pl.BlockSpec((tb, d_out), lambda i, j, k: (i, 0)),
            scratch_shapes=[pltpu.VMEM((tb, th), jnp.float32),     # hidden slab
                            pltpu.VMEM((tb, d_out), jnp.float32)],  # output acc
        ),
        compiler_params=pltpu.CompilerParams(
            dimension_semantics=("parallel", "arbitrary", "arbitrary"),
            vmem_limit_bytes=vmem_limit,
        ),
    )
    out = kernel(x2, w1, b1_2d, w2, b2_2d)
    return out.reshape(*lead, d_out)


if __name__ == "__main__":
    key = jax.random.PRNGKey(0)
    k1, k2, k3, k4, k5 = jax.random.split(key, 5)

    # Small deterministic shapes: batch=2, seq=8, input_dim=16, hidden=32, out=8.
    batch, seq, d_in, hidden, d_out = 2, 8, 16, 32, 8
    x = jax.random.normal(k1, (batch, seq, d_in), dtype=jnp.float32)
    # PyTorch nn.Linear stores (out, in); we keep the (in, out) transpose.
    w1 = jax.random.normal(k2, (d_in, hidden), dtype=jnp.float32) / math.sqrt(d_in)
    b1 = jax.random.normal(k3, (hidden,), dtype=jnp.float32) * 0.1
    w2 = jax.random.normal(k4, (hidden, d_out), dtype=jnp.float32) / math.sqrt(hidden)
    b2 = jax.random.normal(k5, (d_out,), dtype=jnp.float32) * 0.1

    y = mlp_forward(x, w1, b1, w2, b2)
    y = jax.block_until_ready(y)

    # Pure-JAX reference of the PyTorch forward (default MLP config).
    h_ref = x @ w1 + b1
    h_ref = h_ref * jax.nn.sigmoid(h_ref)   # SiLU
    y_ref = h_ref @ w2 + b2

    assert y.shape == y_ref.shape, (y.shape, y_ref.shape)
    max_err = float(jnp.max(jnp.abs(y - y_ref)))
    if max_err > 1e-2:
        raise AssertionError(f"fused MLP kernel mismatch: max abs err = {max_err}")
    print("KERNEL_OK")
</pallas_src>

<mosaic_0001>
module attributes {stable_mosaic.version = 11 : i64} {
  func.func @_fused_mlp_kernel(%arg0: i32, %arg1: i32, %arg2: i32, %arg3: memref<8x16xf32, #tpu.memory_space<vmem>>, %arg4: memref<16x32xf32, #tpu.memory_space<vmem>>, %arg5: memref<1x32xf32, #tpu.memory_space<vmem>>, %arg6: memref<32x8xf32, #tpu.memory_space<vmem>>, %arg7: memref<1x8xf32, #tpu.memory_space<vmem>>, %arg8: memref<8x8xf32, #tpu.memory_space<vmem>>, %arg9: memref<8x32xf32, #tpu.memory_space<vmem>>, %arg10: memref<8x8xf32, #tpu.memory_space<vmem>>) attributes {dimension_semantics = [#tpu.dimension_semantics<parallel>, #tpu.dimension_semantics<arbitrary>, #tpu.dimension_semantics<arbitrary>], iteration_bounds = array<i64: 2, 1, 1>, scalar_prefetch = 0 : i64, scratch_operands = 2 : i64, tpu.core_type = #tpu.core_type<tc>, window_params = [{transform_indices = @transform_0, window_bounds = array<i64: 8, 16>}, {pipeline_mode = #tpu.pipeline_mode<synchronous>, transform_indices = @transform_1, window_bounds = array<i64: 16, 32>}, {pipeline_mode = #tpu.pipeline_mode<synchronous>, transform_indices = @transform_2, window_bounds = array<i64: 1, 32>}, {pipeline_mode = #tpu.pipeline_mode<synchronous>, transform_indices = @transform_3, window_bounds = array<i64: 32, 8>}, {pipeline_mode = #tpu.pipeline_mode<synchronous>, transform_indices = @transform_4, window_bounds = array<i64: 1, 8>}, {transform_indices = @transform_5, window_bounds = array<i64: 8, 8>}]} {
    %c0_i32 = arith.constant 0 : i32
    %0 = arith.cmpi eq, %arg1, %c0_i32 : i32
    %c0_i32_0 = arith.constant 0 : i32
    %1 = arith.cmpi eq, %arg2, %c0_i32_0 : i32
    %2 = arith.andi %0, %1 : i1
    %3 = arith.extui %2 : i1 to i32
    %c0_i32_1 = arith.constant 0 : i32
    %4 = arith.cmpi ne, %3, %c0_i32_1 : i32
    scf.if %4 {
      %cst_13 = arith.constant 0.000000e+00 : f32
      %17 = vector.broadcast %cst_13 : f32 to vector<8x8xf32>
      %c0_14 = arith.constant 0 : index
      %c0_15 = arith.constant 0 : index
      %18 = vector.load %arg10[%c0_14, %c0_15] : memref<8x8xf32, #tpu.memory_space<vmem>>, vector<8x8xf32>
      tpu.vector_store %arg10[%c0_14, %c0_15], %17 {strides = array<i32>} : memref<8x8xf32, #tpu.memory_space<vmem>>, vector<8x8xf32>,
    } else {
    }
    %c0_i32_2 = arith.constant 0 : i32
    %5 = arith.cmpi eq, %arg2, %c0_i32_2 : i32
    %6 = arith.extui %5 : i1 to i32
    %c0_i32_3 = arith.constant 0 : i32
    %7 = arith.cmpi ne, %6, %c0_i32_3 : i32
    scf.if %7 {
      %cst_13 = arith.constant 0.000000e+00 : f32
      %17 = vector.broadcast %cst_13 : f32 to vector<8x32xf32>
      %c0_14 = arith.constant 0 : index
      %c0_15 = arith.constant 0 : index
      %18 = vector.load %arg9[%c0_14, %c0_15] : memref<8x32xf32, #tpu.memory_space<vmem>>, vector<8x32xf32>
      tpu.vector_store %arg9[%c0_14, %c0_15], %17 {strides = array<i32>} : memref<8x32xf32, #tpu.memory_space<vmem>>, vector<8x32xf32>,
    } else {
    }
    %c0 = arith.constant 0 : index
    %c0_4 = arith.constant 0 : index
    %8 = vector.load %arg9[%c0, %c0_4] : memref<8x32xf32, #tpu.memory_space<vmem>>, vector<8x32xf32>
    %c0_5 = arith.constant 0 : index
    %c0_6 = arith.constant 0 : index
    %9 = vector.load %arg3[%c0_5, %c0_6] : memref<8x16xf32, #tpu.memory_space<vmem>>, vector<8x16xf32>
    %c0_7 = arith.constant 0 : index
    %c0_8 = arith.constant 0 : index
    %10 = vector.load %arg4[%c0_7, %c0_8] : memref<16x32xf32, #tpu.memory_space<vmem>>, vector<16x32xf32>
    %cst = arith.constant dense<0.000000e+00> : vector<8x32xf32>
    %11 = tpu.matmul %9, %10, %cst {dimension_numbers = #tpu.dot_dimension_numbers<[1], [0], [0], [1], [0, 0, 1, 1], [], []>} : vector<8x16xf32>, vector<16x32xf32>, vector<8x32xf32> -> vector<8x32xf32>
    %12 = arith.addf %8, %11 : vector<8x32xf32>
    %c0_9 = arith.constant 0 : index
    %c0_10 = arith.constant 0 : index
    %13 = vector.load %arg9[%c0_9, %c0_10] : memref<8x32xf32, #tpu.memory_space<vmem>>, vector<8x32xf32>
    tpu.vector_store %arg9[%c0_9, %c0_10], %12 {strides = array<i32>} : memref<8x32xf32, #tpu.memory_space<vmem>>, vector<8x32xf32>,
    %c0_i32_11 = arith.constant 0 : i32
    %14 = arith.cmpi eq, %arg2, %c0_i32_11 : i32
    %15 = arith.extui %14 : i1 to i32
    %c0_i32_12 = arith.constant 0 : i32
    %16 = arith.cmpi ne, %15, %c0_i32_12 : i32
    scf.if %16 {
      %c0_13 = arith.constant 0 : index
      %c0_14 = arith.constant 0 : index
      %17 = vector.load %arg9[%c0_13, %c0_14] : memref<8x32xf32, #tpu.memory_space<vmem>>, vector<8x32xf32>
      %c0_15 = arith.constant 0 : index
      %c0_16 = arith.constant 0 : index
      %18 = vector.load %arg5[%c0_15, %c0_16] : memref<1x32xf32, #tpu.memory_space<vmem>>, vector<1x32xf32>
      %19 = vector.broadcast %18 : vector<1x32xf32> to vector<8x32xf32>
      %20 = arith.addf %17, %19 : vector<8x32xf32>
      %cst_17 = arith.constant 0.000000e+00 : f32
      %21 = vector.broadcast %cst_17 : f32 to vector<8x32xf32>
      %22 = arith.subf %21, %20 : vector<8x32xf32>
      %23 = math.exp %22 : vector<8x32xf32>
      %cst_18 = arith.constant 1.000000e+00 : f32
      %24 = vector.broadcast %cst_18 : f32 to vector<8x32xf32>
      %25 = arith.addf %24, %23 : vector<8x32xf32>
      %26 = tpu.reciprocal %25 {approx = true} : vector<8x32xf32> -> vector<8x32xf32>
      %27 = arith.mulf %20, %26 : vector<8x32xf32>
      %c0_19 = arith.constant 0 : index
      %c0_20 = arith.constant 0 : index
      %28 = vector.load %arg10[%c0_19, %c0_20] : memref<8x8xf32, #tpu.memory_space<vmem>>, vector<8x8xf32>
      %c0_21 = arith.constant 0 : index
      %c0_22 = arith.constant 0 : index
      %29 = vector.load %arg6[%c0_21, %c0_22] : memref<32x8xf32, #tpu.memory_space<vmem>>, vector<32x8xf32>
      %cst_23 = arith.constant dense<0.000000e+00> : vector<8x8xf32>
      %30 = tpu.matmul %27, %29, %cst_23 {dimension_numbers = #tpu.dot_dimension_numbers<[1], [0], [0], [1], [0, 0, 1, 1], [], []>} : vector<8x32xf32>, vector<32x8xf32>, vector<8x8xf32> -> vector<8x8xf32>
      %31 = arith.addf %28, %30 : vector<8x8xf32>
      %c0_24 = arith.constant 0 : index
      %c0_25 = arith.constant 0 : index
      %32 = vector.load %arg10[%c0_24, %c0_25] : memref<8x8xf32, #tpu.memory_space<vmem>>, vector<8x8xf32>
      tpu.vector_store %arg10[%c0_24, %c0_25], %31 {strides = array<i32>} : memref<8x8xf32, #tpu.memory_space<vmem>>, vector<8x8xf32>,
      %c0_i32_26 = arith.constant 0 : i32
      %33 = arith.cmpi eq, %arg1, %c0_i32_26 : i32
      %34 = arith.extui %33 : i1 to i32
      %c0_i32_27 = arith.constant 0 : i32
      %35 = arith.cmpi ne, %34, %c0_i32_27 : i32
      scf.if %35 {
        %c0_28 = arith.constant 0 : index
        %c0_29 = arith.constant 0 : index
        %36 = vector.load %arg10[%c0_28, %c0_29] : memref<8x8xf32, #tpu.memory_space<vmem>>, vector<8x8xf32>
        %c0_30 = arith.constant 0 : index
        %c0_31 = arith.constant 0 : index
        %37 = vector.load %arg7[%c0_30, %c0_31] : memref<1x8xf32, #tpu.memory_space<vmem>>, vector<1x8xf32>
        %38 = vector.broadcast %37 : vector<1x8xf32> to vector<8x8xf32>
        %39 = arith.addf %36, %38 : vector<8x8xf32>
        %c0_32 = arith.constant 0 : index
        %c0_33 = arith.constant 0 : index
        %40 = vector.load %arg8[%c0_32, %c0_33] : memref<8x8xf32, #tpu.memory_space<vmem>>, vector<8x8xf32>
        tpu.vector_store %arg8[%c0_32, %c0_33], %39 {strides = array<i32>} : memref<8x8xf32, #tpu.memory_space<vmem>>, vector<8x8xf32>,
      } else {
      }
    } else {
    }
    return
  }
  func.func @transform_0(%arg0: i32, %arg1: i32, %arg2: i32) -> (i32, i32) {
    %c0_i32 = arith.constant 0 : i32
    return %arg0, %arg2 : i32, i32
  }
  func.func @transform_1(%arg0: i32, %arg1: i32, %arg2: i32) -> (i32, i32) {
    %c0_i32 = arith.constant 0 : i32
    return %arg2, %arg1 : i32, i32
  }
  func.func @transform_2(%arg0: i32, %arg1: i32, %arg2: i32) -> (i32, i32) {
    %c0_i32 = arith.constant 0 : i32
    %c0_i32_0 = arith.constant 0 : i32
    return %c0_i32, %arg1 : i32, i32
  }
  func.func @transform_3(%arg0: i32, %arg1: i32, %arg2: i32) -> (i32, i32) {
    %c0_i32 = arith.constant 0 : i32
    %c0_i32_0 = arith.constant 0 : i32
    return %arg1, %c0_i32 : i32, i32
  }
  func.func @transform_4(%arg0: i32, %arg1: i32, %arg2: i32) -> (i32, i32) {
    %c0_i32 = arith.constant 0 : i32
    %c0_i32_0 = arith.constant 0 : i32
    %c0_i32_1 = arith.constant 0 : i32
    return %c0_i32, %c0_i32_0 : i32, i32
  }
  func.func @transform_5(%arg0: i32, %arg1: i32, %arg2: i32) -> (i32, i32) {
    %c0_i32 = arith.constant 0 : i32
    %c0_i32_0 = arith.constant 0 : i32
    return %arg0, %c0_i32 : i32, i32
  }
}

</mosaic_0001>

<llo_original>
// kernel: tpu_custom_call.1
$region0: #{tpu_custom_call.1}
  #allocation0 [shape = 'u32[]', space=smem, size = 0x4, offset = 0x4, fixed_abs, tag = 'smem constant byte address 0x4 - core index']
  #allocation1 [shape = 'u32[144,128]{1,0:T(1,128)}', space=vmem, size = 0x12000, scoped, tag = 'internal scratch']
  #allocation2 [shape = 'f32[8,32]{1,0:T(8,128)}', space=vmem, size = 0x1000, scoped, tag = 'scratch operand']
  #allocation3 [shape = 'f32[8,8]{1,0:T(8,128)}', space=vmem, size = 0x1000, scoped, tag = 'scratch operand']
  %s0 = inlined_call_operand.vmem [shape: f32[16,16], index: 0, kind: input, shape index: {}]
  %s1 = inlined_call_operand.vmem [shape: f32[16,32], index: 1, kind: input, shape index: {}]
  %s2 = inlined_call_operand.vmem [shape: f32[1,32], index: 2, kind: input, shape index: {}]
  %s3 = inlined_call_operand.vmem [shape: f32[32,8], index: 3, kind: input, shape index: {}]
  %s4 = inlined_call_operand.vmem [shape: f32[1,8], index: 4, kind: input, shape index: {}]
  %s5 = inlined_call_operand.vmem [shape: f32[16,8], index: 5, kind: output, shape index: {}]
  %s6 = sld [smem:[#allocation0]]
  $region69: #{tpu_custom_call.1} parent=0
    _
  %s8 = ssub.s32 1, %s6
  %s9 = scalar_select 0, %s8, %s6
  loop: start=0, step=1, limit=4
  $region2: #{tpu_custom_call.1} parent=0 // loop_pre_header
    _
  $region3: #{tpu_custom_call.1} parent=0 // loop_header
    %s11 = sphi 0, %s15
    %p12 = scmp.ge.s32.totalorder %s11, 4
    %s18 = sphi 0, %s37
    %s19 = sphi 0, %s33
    %s20 = sphi 0, %s29
    %s21 = sphi 0, %s18
    %s22 = sphi 0, %s19
    %s23 = sphi 0, %s20
    %s24 = sphi 0, %s21
    %s25 = sphi 0, %s22
    %s26 = sphi 0, %s23
    %s42 = sphi 0, %s44
    %s45 = sphi 0, %s42
    %s46 = sphi 0, %s45
    %s62 = sphi 0, %s46
    %s70 = sphi 0, %s72
    %s73 = sphi 0, %s70
    %s74 = sphi 0, %s73
    %s90 = sphi 0, %s74
    %s96 = sphi 0, %s98
    %s99 = sphi 0, %s96
    %s100 = sphi 0, %s99
    %s116 = sphi 0, %s100
    %s122 = sphi 0, %s124
    %s125 = sphi 0, %s122
    %s126 = sphi 0, %s125
    %s142 = sphi 0, %s126
    %s146 = sphi 0, %s146
    %s148 = sphi 0, %s146
    %s149 = sphi 0, %s148
    %s163 = sphi 0, %s149
    %s169 = sphi 0, %s171
    %s172 = sphi 0, %s169
    %s173 = sphi 0, %s172
    %s189 = sphi 0, %s173
  $region4: #{tpu_custom_call.1} parent=0 // loop_header_branch
    %14 = sbr.rel (%p12) target = $region8
  $region5: #{tpu_custom_call.1} parent=0 // loop_body
    %s16 = ssub.s32 %s11, 1
    %s17 = ssub.s32 %s11, 2
    %s27 = sadd.s32 1, %s20
    %p28 = scmp.ge.s32.totalorder %s27, 1
    %s29 = scalar_select %p28, 0, %s27
    %s30 = sadd.s32 1, %s19
    %s31 = scalar_select %p28, %s30, %s19
    %p32 = scmp.ge.s32.totalorder %s31, 1
    %s33 = scalar_select %p32, 0, %s31
    %s34 = sadd.s32 1, %s18
    %s35 = scalar_select %p32, %s34, %s18
    %p36 = scmp.ge.s32.totalorder %s35, 2
    %s37 = scalar_select %p36, 0, %s35
    %s38 = ssub.s32 %s18, %s37
    %s39 = ssub.s32 %s20, %s29
    %s40 = sor.u32 %s38, %s39
    %p41 = scmp.eq.s32.totalorder %s40, 0
    %s43 = sadd.s32 %s42, 1
    %s44 = scalar_select %p41, %s42, %s43
    %p47 = pneg %p41
    %p48 = scmp.eq.s32.totalorder %s11, 1
    %p49 = por %p47, %p48
    %p50 = scmp.ne.s32.totalorder %s42, %s45
    %p51 = scmp.eq.s32.totalorder %s11, 0
    %p52 = por %p50, %p51
    %p53 = scmp.ne.s32.totalorder %s42, %s45
    %p54 = scmp.eq.s32.totalorder %s16, 1
    %p55 = por %p53, %p54
    %p56 = scmp.ne.s32.totalorder %s45, %s46
    %p57 = scmp.eq.s32.totalorder %s16, 0
    %p58 = por %p56, %p57
    %p59 = scmp.ne.s32.totalorder %s45, %s46
    %p60 = scmp.eq.s32.totalorder %s17, 1
    %p61 = por %p59, %p60
    %p63 = scmp.ne.s32.totalorder %s46, %s62
    %p64 = scmp.eq.s32.totalorder %s17, 0
    %p65 = por %p63, %p64
    %s66 = ssub.s32 %s20, %s29
    %s67 = ssub.s32 %s19, %s33
    %s68 = sor.u32 %s66, %s67
    %p69 = scmp.eq.s32.totalorder %s68, 0
    %s71 = sadd.s32 %s70, 1
    %s72 = scalar_select %p69, %s70, %s71
    %p75 = pneg %p69
    %p76 = scmp.eq.s32.totalorder %s11, 1
    %p77 = por %p75, %p76
    %p78 = scmp.ne.s32.totalorder %s70, %s73
    %p79 = scmp.eq.s32.totalorder %s11, 0
    %p80 = por %p78, %p79
    %p81 = scmp.ne.s32.totalorder %s70, %s73
    %p82 = scmp.eq.s32.totalorder %s16, 1
    %p83 = por %p81, %p82
    %p84 = scmp.ne.s32.totalorder %s73, %s74
    %p85 = scmp.eq.s32.totalorder %s16, 0
    %p86 = por %p84, %p85
    %p87 = scmp.ne.s32.totalorder %s73, %s74
    %p88 = scmp.eq.s32.totalorder %s17, 1
    %p89 = por %p87, %p88
    %p91 = scmp.ne.s32.totalorder %s74, %s90
    %p92 = scmp.eq.s32.totalorder %s17, 0
    %p93 = por %p91, %p92
    %s94 = ssub.s32 %s19, %s33
    %p95 = scmp.eq.s32.totalorder %s94, 0
    %s97 = sadd.s32 %s96, 1
    %s98 = scalar_select %p95, %s96, %s97
    %p101 = pneg %p95
    %p102 = scmp.eq.s32.totalorder %s11, 1
    %p103 = por %p101, %p102
    %p104 = scmp.ne.s32.totalorder %s96, %s99
    %p105 = scmp.eq.s32.totalorder %s11, 0
    %p106 = por %p104, %p105
    %p107 = scmp.ne.s32.totalorder %s96, %s99
    %p108 = scmp.eq.s32.totalorder %s16, 1
    %p109 = por %p107, %p108
    %p110 = scmp.ne.s32.totalorder %s99, %s100
    %p111 = scmp.eq.s32.totalorder %s16, 0
    %p112 = por %p110, %p111
    %p113 = scmp.ne.s32.totalorder %s99, %s100
    %p114 = scmp.eq.s32.totalorder %s17, 1
    %p115 = por %p113, %p114
    %p117 = scmp.ne.s32.totalorder %s100, %s116
    %p118 = scmp.eq.s32.totalorder %s17, 0
    %p119 = por %p117, %p118
    %s120 = ssub.s32 %s19, %s33
    %p121 = scmp.eq.s32.totalorder %s120, 0
    %s123 = sadd.s32 %s122, 1
    %s124 = scalar_select %p121, %s122, %s123
    %p127 = pneg %p121
    %p128 = scmp.eq.s32.totalorder %s11, 1
    %p129 = por %p127, %p128
    %p130 = scmp.ne.s32.totalorder %s122, %s125
    %p131 = scmp.eq.s32.totalorder %s11, 0
    %p132 = por %p130, %p131
    %p133 = scmp.ne.s32.totalorder %s122, %s125
    %p134 = scmp.eq.s32.totalorder %s16, 1
    %p135 = por %p133, %p134
    %p136 = scmp.ne.s32.totalorder %s125, %s126
    %p137 = scmp.eq.s32.totalorder %s16, 0
    %p138 = por %p136, %p137
    %p139 = scmp.ne.s32.totalorder %s125, %s126
    %p140 = scmp.eq.s32.totalorder %s17, 1
    %p141 = por %p139, %p140
    %p143 = scmp.ne.s32.totalorder %s126, %s142
    %p144 = scmp.eq.s32.totalorder %s17, 0
    %p145 = por %p143, %p144
    %s147 = sadd.s32 %s146, 1
    %p150 = scmp.eq.s32.totalorder %s11, 1
    %p151 = scmp.ne.s32.totalorder %s146, %s148
    %p152 = scmp.eq.s32.totalorder %s11, 0
    %p153 = por %p151, %p152
    %p154 = scmp.ne.s32.totalorder %s146, %s148
    %p155 = scmp.eq.s32.totalorder %s16, 1
    %p156 = por %p154, %p155
    %p157 = scmp.ne.s32.totalorder %s148, %s149
    %p158 = scmp.eq.s32.totalorder %s16, 0
    %p159 = por %p157, %p158
    %p160 = scmp.ne.s32.totalorder %s148, %s149
    %p161 = scmp.eq.s32.totalorder %s17, 1
    %p162 = por %p160, %p161
    %p164 = scmp.ne.s32.totalorder %s149, %s163
    %p165 = scmp.eq.s32.totalorder %s17, 0
    %p166 = por %p164, %p165
    %s167 = ssub.s32 %s18, %s37
    %p168 = scmp.eq.s32.totalorder %s167, 0
    %s170 = sadd.s32 %s169, 1
    %s171 = scalar_select %p168, %s169, %s170
    %p174 = pneg %p168
    %p175 = scmp.eq.s32.totalorder %s11, 1
    %p176 = por %p174, %p175
    %p177 = scmp.ne.s32.totalorder %s169, %s172
    %p178 = scmp.eq.s32.totalorder %s11, 0
    %p179 = por %p177, %p178
    %p180 = scmp.ne.s32.totalorder %s169, %s172
    %p181 = scmp.eq.s32.totalorder %s16, 1
    %p182 = por %p180, %p181
    %p183 = scmp.ne.s32.totalorder %s172, %s173
    %p184 = scmp.eq.s32.totalorder %s16, 0
    %p185 = por %p183, %p184
    %p186 = scmp.ne.s32.totalorder %s172, %s173
    %p187 = scmp.eq.s32.totalorder %s17, 1
    %p188 = por %p186, %p187
    %p190 = scmp.ne.s32.totalorder %s173, %s189
    %p191 = scmp.eq.s32.totalorder %s17, 0
    %p192 = por %p190, %p191
    %p193 = scmp.le.s32.totalorder 1, %s11
    %p194 = scmp.lt.s32.totalorder %s11, 3
    %p195 = pnand %p193, %p194
    %p196 = pneg %p195
    // Predicated region
    $region9: #{tpu_custom_call.1} parent=5 // pred_check
      _
    $region10: #{tpu_custom_call.1} parent=5 // pred_check_branch
      %198 = sbr.rel (%p195) target = $region12
    $region11: #{tpu_custom_call.1} parent=5 // pred_region
      %s199 = ssub.s32 %s11, 1
      // Predicated region
      $region13: #{tpu_custom_call.1} parent=11 // pred_check
        %p200 = pneg %p86
      $region14: #{tpu_custom_call.1} parent=11 // pred_check_branch
        %202 = sbr.rel (%p200) target = $region16
      $region15: #{tpu_custom_call.1} parent=11 // pred_region
        %s203 = smul.u32 2, %s23
        %p204 = scmp.lt.s32.totalorder %s203, 1
        %s205 = scalar_select %p204, %s203, 1
        %p206 = scmp.lt.s32.totalorder %s22, 0
        %s207 = scalar_select %p206, %s22, 0
        %s208 = sadd.s32 %s207, %s205
        %s209 = smul.addr %s208, 8
        %s210 = scalar_lea.vmem %s1, %s209
        %s211 = smul.u32 2, %s23
      $region16: #{tpu_custom_call.1} parent=11 // pred_fallthru
        _
      // Predicated region
      $region17: #{tpu_custom_call.1} parent=11 // pred_check
        %p212 = pneg %p112
      $region18: #{tpu_custom_call.1} parent=11 // pred_check_branch
        %214 = sbr.rel (%p212) target = $region20
      $region19: #{tpu_custom_call.1} parent=11 // pred_region
        %p215 = scmp.lt.s32.totalorder %s22, 0
        %s216 = scalar_select %p215, %s22, 0
        %s217 = scalar_lea.vmem %s2, %s216
      $region20: #{tpu_custom_call.1} parent=11 // pred_fallthru
        _
      // Predicated region
      $region21: #{tpu_custom_call.1} parent=11 // pred_check
        %p218 = pneg %p138
      $region22: #{tpu_custom_call.1} parent=11 // pred_check_branch
        %220 = sbr.rel (%p218) target = $region24
      $region23: #{tpu_custom_call.1} parent=11 // pred_region
        %s221 = smul.u32 4, %s22
        %p222 = scmp.lt.s32.totalorder %s221, 3
        %s223 = scalar_select %p222, %s221, 3
        %s224 = smul.addr %s223, 8
        %s225 = scalar_lea.vmem %s3, %s224
        %s226 = smul.u32 4, %s22
      $region24: #{tpu_custom_call.1} parent=11 // pred_fallthru
        _
      // Predicated region
      $region25: #{tpu_custom_call.1} parent=11 // pred_check
        %p227 = pneg %p159
      $region26: #{tpu_custom_call.1} parent=11 // pred_check_branch
        %229 = sbr.rel (%p227) target = $region28
      $region27: #{tpu_custom_call.1} parent=11 // pred_region
        _
      $region28: #{tpu_custom_call.1} parent=11 // pred_fallthru
        _
    $region12: #{tpu_custom_call.1} parent=5 // pred_fallthru
      _
    %p230 = scmp.lt.s32.totalorder %s11, 2
    // Predicated region
    $region29: #{tpu_custom_call.1} parent=5 // pred_check
      %p231 = pneg %p230
    $region30: #{tpu_custom_call.1} parent=5 // pred_check_branch
      %233 = sbr.rel (%p231) target = $region32
    $region31: #{tpu_custom_call.1} parent=5 // pred_region
      // Predicated region
      $region33: #{tpu_custom_call.1} parent=31 // pred_check
        %p234 = pneg %p52
      $region34: #{tpu_custom_call.1} parent=31 // pred_check_branch
        %236 = sbr.rel (%p234) target = $region36
      $region35: #{tpu_custom_call.1} parent=31 // pred_region
        %p237 = scmp.lt.s32.totalorder %s18, 1
        %s238 = scalar_select %p237, %s18, 1
        %p239 = scmp.lt.s32.totalorder %s20, 0
        %s240 = scalar_select %p239, %s20, 0
        %s241 = sadd.s32 %s240, %s238
        %s242 = smul.addr %s241, 8
        %s243 = scalar_lea.vmem %s0, %s242
      $region36: #{tpu_custom_call.1} parent=31 // pred_fallthru
        _
    $region32: #{tpu_custom_call.1} parent=5 // pred_fallthru
      _
    %p244 = scmp.le.s32.totalorder 1, %s11
    %p245 = scmp.lt.s32.totalorder %s11, 3
    %p246 = pnand %p244, %p245
    %p247 = pneg %p246
    // Predicated region
    $region37: #{tpu_custom_call.1} parent=5 // pred_check
      _
    $region38: #{tpu_custom_call.1} parent=5 // pred_check_branch
      %249 = sbr.rel (%p246) target = $region40
    $region39: #{tpu_custom_call.1} parent=5 // pred_region
      %s250 = ssub.s32 %s11, 1
      %p251 = scmp.lt.s32.totalorder %s21, 1
      %s252 = scalar_select %p251, %s21, 1
      %p253 = scmp.lt.s32.totalorder %s23, 0
      %s254 = scalar_select %p253, %s23, 0
      %s255 = sadd.s32 %s254, %s252
      %s256 = smul.addr %s255, 8
      %s257 = scalar_lea.vmem %s0, %s256
      %p258 = pneg %p58
      %p259 = pneg %p55
      %s260 = smul.u32 2, %s23
      %p261 = scmp.lt.s32.totalorder %s260, 1
      %s262 = scalar_select %p261, %s260, 1
      %p263 = scmp.lt.s32.totalorder %s22, 0
      %s264 = scalar_select %p263, %s22, 0
      %s265 = sadd.s32 %s264, %s262
      %s266 = smul.addr %s265, 8
      %s267 = scalar_lea.vmem %s1, %s266
      %p268 = pneg %p86
      %p269 = pneg %p83
      %p270 = scmp.lt.s32.totalorder %s22, 0
      %s271 = scalar_select %p270, %s22, 0
      %s272 = scalar_lea.vmem %s2, %s271
      %p273 = pneg %p112
      %p274 = pneg %p109
      %s275 = smul.u32 4, %s22
      %p276 = scmp.lt.s32.totalorder %s275, 3
      %s277 = scalar_select %p276, %s275, 3
      %s278 = smul.addr %s277, 8
      %s279 = scalar_lea.vmem %s3, %s278
      %p280 = pneg %p138
      %p281 = pneg %p135
      %p282 = pneg %p159
      %p283 = pneg %p156
      %p284 = pneg %p185
      %p285 = pneg %p182
      %p286 = scmp.lt.s32.totalorder %s21, 1
      %s287 = scalar_select %p286, %s21, 1
      %s288 = smul.addr %s287, 8
      %s289 = scalar_lea.vmem %s5, %s288
      %p290 = scmp.lt.s32.totalorder %s21, 1
      %s291 = scalar_select %p290, %s21, 1
      %p292 = scmp.lt.s32.totalorder %s23, 0
      %s293 = scalar_select %p292, %s23, 0
      %s294 = sadd.s32 %s293, %s291
      %s295 = smul.addr %s294, 8
      %s296 = scalar_lea.vmem %s0, %s295
      %s297 = smul.u32 2, %s23
      %p298 = scmp.lt.s32.totalorder %s297, 1
      %s299 = scalar_select %p298, %s297, 1
      %p300 = scmp.lt.s32.totalorder %s22, 0
      %s301 = scalar_select %p300, %s22, 0
      %s302 = sadd.s32 %s301, %s299
      %s303 = smul.addr %s302, 8
      %s304 = scalar_lea.vmem %s1, %s303
      %s305 = smul.u32 2, %s23
      %p306 = scmp.lt.s32.totalorder %s22, 0
      %s307 = scalar_select %p306, %s22, 0
      %s308 = scalar_lea.vmem %s2, %s307
      %s309 = smul.u32 4, %s22
      %p310 = scmp.lt.s32.totalorder %s309, 3
      %s311 = scalar_select %p310, %s309, 3
      %s312 = smul.addr %s311, 8
      %s313 = scalar_lea.vmem %s3, %s312
      %s314 = smul.u32 4, %s22
      %p315 = scmp.lt.s32.totalorder %s21, 1
      %s316 = scalar_select %p315, %s21, 1
      %s317 = smul.addr %s316, 8
      %s318 = scalar_lea.vmem %s5, %s317
      %p319 = scmp.eq.s32.totalorder %s22, 0
      %p320 = scmp.eq.s32.totalorder %s23, 0
      %p321 = pnand %p319, %p320
      %p322 = pneg %p321
      // Predicated region
      $region41: #{tpu_custom_call.1} parent=39 // pred_check
        _
      $region42: #{tpu_custom_call.1} parent=39 // pred_check_branch
        %324 = sbr.rel (%p321) target = $region44
      $region43: #{tpu_custom_call.1} parent=39 // pred_region
        %vm325 = vcmask 64512
        %326 = vst.msk [vmem:[#allocation3] sm:$0xff] %vm325, 0.0
      $region44: #{tpu_custom_call.1} parent=39 // pred_fallthru
        _
      // Predicated region
      $region45: #{tpu_custom_call.1} parent=39 // pred_check
        %p327 = pneg %p320
      $region46: #{tpu_custom_call.1} parent=39 // pred_check_branch
        %329 = sbr.rel (%p327) target = $region48
      $region47: #{tpu_custom_call.1} parent=39 // pred_region
        %vm330 = vcmask 261120
        %331 = vst.msk [vmem:[#allocation2] sm:$0xff] %vm330, 0.0
      $region48: #{tpu_custom_call.1} parent=39 // pred_fallthru
        _
      %v332 = vld [vmem:[#allocation2] sm:$0xff]
      %v333 = vld [vmem:[%s296] sm:$0xff]
      %v334 = vld [vmem:[%s304] sm:$0xff]
      %v335 = vld [vmem:[%s304 + $0x8] sm:$0xff]
      %vm336 = vcmask 130048
      %v338 = vsel %vm336, %v333, 0
      %340 = vmatprep.subr.mxu0 0.0
      %341 = vmatpush1.msra.mxu0 %v334
      %342 = vmatprep.subr.mxu0 0.0
      %343 = vmatpush1.msra.mxu0 %v335
      %344 = vmatprep.subr.mxu0 0.0
      %345 = vmatpush1.msra.mxu0 0.0
      %346 = vmatprep.subr.mxu0 0.0
      %347 = vmatpush1.msra.mxu0 0.0
      %348 = vmatprep.subr.mxu0 0.0
      %349 = vmatpush1.msra.mxu0 0.0
      %350 = vmatprep.subr.mxu0 0.0
      %351 = vmatpush1.msra.mxu0 0.0
      %352 = vmatprep.subr.mxu0 0.0
      %353 = vmatpush1.msra.mxu0 0.0
      %354 = vmatprep.subr.mxu0 0.0
      %355 = vmatpush1.msra.mxu0 0.0
      %356 = vmatprep.subr.mxu0 0.0
      %357 = vmatpush1.msra.mxu0 0.0
      %358 = vmatprep.subr.mxu0 0.0
      %359 = vmatpush1.msra.mxu0 0.0
      %360 = vmatprep.subr.mxu0 0.0
      %361 = vmatpush1.msra.mxu0 0.0
      %362 = vmatprep.subr.mxu0 0.0
      %363 = vmatpush1.msra.mxu0 0.0
      %364 = vmatprep.subr.mxu0 0.0
      %365 = vmatpush1.msra.mxu0 0.0
      %366 = vmatprep.subr.mxu0 0.0
      %367 = vmatpush1.msra.mxu0 0.0
      %368 = vmatprep.subr.mxu0 0.0
      %369 = vmatpush1.msra.mxu0 0.0
      %370 = vmatprep.subr.mxu0 0.0
      %371 = vmatpush1.msra.mxu0 0.0
      %372 = vmatprep.subr.mxu0 0.0
      %373 = vmatpush1.msra.mxu0 0.0
      %374 = vmatprep.subr.mxu0 0.0
      %375 = vmatpush1.msra.mxu0 0.0
      %376 = vmatprep.subr.mxu0 0.0
      %377 = vmatpush1.msra.mxu0 0.0
      %378 = vmatprep.subr.mxu0 0.0
      %379 = vmatpush1.msra.mxu0 0.0
      %380 = vmatprep.subr.mxu0 0.0
      %381 = vmatpush1.msra.mxu0 0.0
      %382 = vmatprep.subr.mxu0 0.0
      %383 = vmatpush1.msra.mxu0 0.0
      %384 = vmatprep.subr.mxu0 0.0
      %385 = vmatpush1.msra.mxu0 0.0
      %386 = vmatprep.subr.mxu0 0.0
      %387 = vmatpush1.msra.mxu0 0.0
      %388 = vmatprep.subr.mxu0 0.0
      %389 = vmatpush1.msra.mxu0 0.0
      %390 = vmatprep.subr.mxu0 0.0
      %391 = vmatpush1.msra.mxu0 0.0
      %392 = vmatprep.subr.mxu0 0.0
      %393 = vmatpush1.msra.mxu0 0.0
      %394 = vmatprep.subr.mxu0 0.0
      %395 = vmatpush1.msra.mxu0 0.0
      %396 = vmatprep.subr.mxu0 0.0
      %397 = vmatpush1.msra.mxu0 0.0
      %398 = vmatprep.subr.mxu0 0.0
      %399 = vmatpush1.msra.mxu0 0.0
      %400 = vmatprep.subr.mxu0 0.0
      %401 = vmatpush1.msra.mxu0 0.0
      %402 = vmatprep.subr.mxu0 0.0
      %403 = vmatpush1.msra.mxu0 0.0
      %404 = vmatprep.mubr.f32.mxu0 0.0
      %405 = vmatmul.mubr.f32.gmra.mrb[0].mxu0 %v338
      %v406 = vpop.f32.mrb[0].mxu0
      %v407 = vadd.f32 0.0, %v406
      %v408 = vpop.f32.mrb[0].mxu0
      %409 = vdwg.mxu0
      %v410 = vadd.f32 %v332, %v407
      %vm411 = vcmask 261120
      %412 = vst.msk [vmem:[#allocation2] sm:$0xff] %vm411, %v410
      // Predicated region
      $region49: #{tpu_custom_call.1} parent=39 // pred_check
        %p413 = pneg %p320
      $region50: #{tpu_custom_call.1} parent=39 // pred_check_branch
        %415 = sbr.rel (%p413) target = $region52
      $region51: #{tpu_custom_call.1} parent=39 // pred_region
        %v416 = vld [vmem:[#allocation2] sm:$0xff]
        %v417 = vld [vmem:[%s308] sm:$0x1]
        %v419 = vlaneseq
        %v420 = vshrl.u32 %v419, 7
        %v421 = vsub.s32 0, %v420
        %v422 = vrot.slane %v417, %v421
        %v424 = vadd.f32 %v416, %v422
        %v425 = vsub.f32 0.0, %v424
        %v426 = vmul.f32 %v425, 1.442695
        %v427 = vpow.pop %v426
        %v428 = vadd.f32 %v427, 1.0
        %v429 = vrcp.pop %v428
        %v430 = vmul.f32 %v424, %v429
        %v431 = vld [vmem:[#allocation3] sm:$0xff]
        %v432 = vld [vmem:[%s313] sm:$0xff]
        %v433 = vld [vmem:[%s313 + $0x8] sm:$0xff]
        %v434 = vld [vmem:[%s313 + $0x10] sm:$0xff]
        %v435 = vld [vmem:[%s313 + $0x18] sm:$0xff]
        %v437 = vsel %vm411, %v430, 0
        %439 = vmatprep.subr.mxu0 0.0
        %440 = vmatpush1.msra.mxu0 %v432
        %441 = vmatprep.subr.mxu0 0.0
        %442 = vmatpush1.msra.mxu0 %v433
        %443 = vmatprep.subr.mxu0 0.0
        %444 = vmatpush1.msra.mxu0 %v434
        %445 = vmatprep.subr.mxu0 0.0
        %446 = vmatpush1.msra.mxu0 %v435
        %447 = vmatprep.subr.mxu0 0.0
        %448 = vmatpush1.msra.mxu0 0.0
        %449 = vmatprep.subr.mxu0 0.0
        %450 = vmatpush1.msra.mxu0 0.0
        %451 = vmatprep.subr.mxu0 0.0
        %452 = vmatpush1.msra.mxu0 0.0
        %453 = vmatprep.subr.mxu0 0.0
        %454 = vmatpush1.msra.mxu0 0.0
        %455 = vmatprep.subr.mxu0 0.0
        %456 = vmatpush1.msra.mxu0 0.0
        %457 = vmatprep.subr.mxu0 0.0
        %458 = vmatpush1.msra.mxu0 0.0
        %459 = vmatprep.subr.mxu0 0.0
        %460 = vmatpush1.msra.mxu0 0.0
        %461 = vmatprep.subr.mxu0 0.0
        %462 = vmatpush1.msra.mxu0 0.0
        %463 = vmatprep.subr.mxu0 0.0
        %464 = vmatpush1.msra.mxu0 0.0
        %465 = vmatprep.subr.mxu0 0.0
        %466 = vmatpush1.msra.mxu0 0.0
        %467 = vmatprep.subr.mxu0 0.0
        %468 = vmatpush1.msra.mxu0 0.0
        %469 = vmatprep.subr.mxu0 0.0
        %470 = vmatpush1.msra.mxu0 0.0
        %471 = vmatprep.subr.mxu0 0.0
        %472 = vmatpush1.msra.mxu0 0.0
        %473 = vmatprep.subr.mxu0 0.0
        %474 = vmatpush1.msra.mxu0 0.0
        %475 = vmatprep.subr.mxu0 0.0
        %476 = vmatpush1.msra.mxu0 0.0
        %477 = vmatprep.subr.mxu0 0.0
        %478 = vmatpush1.msra.mxu0 0.0
        %479 = vmatprep.subr.mxu0 0.0
        %480 = vmatpush1.msra.mxu0 0.0
        %481 = vmatprep.subr.mxu0 0.0
        %482 = vmatpush1.msra.mxu0 0.0
        %483 = vmatprep.subr.mxu0 0.0
        %484 = vmatpush1.msra.mxu0 0.0
        %485 = vmatprep.subr.mxu0 0.0
        %486 = vmatpush1.msra.mxu0 0.0
        %487 = vmatprep.subr.mxu0 0.0
        %488 = vmatpush1.msra.mxu0 0.0
        %489 = vmatprep.subr.mxu0 0.0
        %490 = vmatpush1.msra.mxu0 0.0
        %491 = vmatprep.subr.mxu0 0.0
        %492 = vmatpush1.msra.mxu0 0.0
        %493 = vmatprep.subr.mxu0 0.0
        %494 = vmatpush1.msra.mxu0 0.0
        %495 = vmatprep.subr.mxu0 0.0
        %496 = vmatpush1.msra.mxu0 0.0
        %497 = vmatprep.subr.mxu0 0.0
        %498 = vmatpush1.msra.mxu0 0.0
        %499 = vmatprep.subr.mxu0 0.0
        %500 = vmatpush1.msra.mxu0 0.0
        %501 = vmatprep.subr.mxu0 0.0
        %502 = vmatpush1.msra.mxu0 0.0
        %503 = vmatprep.mubr.f32.mxu0 0.0
        %504 = vmatmul.mubr.f32.gmra.mrb[0].mxu0 %v437
        %v505 = vpop.f32.mrb[0].mxu0
        %v506 = vadd.f32 0.0, %v505
        %v507 = vpop.f32.mrb[0].mxu0
        %508 = vdwg.mxu0
        %v509 = vadd.f32 %v431, %v506
        %vm510 = vcmask 64512
        %511 = vst.msk [vmem:[#allocation3] sm:$0xff] %vm510, %v509
        // Predicated region
        $region53: #{tpu_custom_call.1} parent=51 // pred_check
          %p512 = pneg %p319
        $region54: #{tpu_custom_call.1} parent=51 // pred_check_branch
          %514 = sbr.rel (%p512) target = $region56
        $region55: #{tpu_custom_call.1} parent=51 // pred_region
          %v515 = vld [vmem:[#allocation3] sm:$0xff]
          %v516 = vld [vmem:[%s4] sm:$0x1]
          %v518 = vlaneseq
          %v519 = vshrl.u32 %v518, 7
          %v520 = vsub.s32 0, %v519
          %v521 = vrot.slane %v516, %v520
          %v523 = vadd.f32 %v515, %v521
          %524 = vst.msk [vmem:[%s318] sm:$0xff] %vm510, %v523
        $region56: #{tpu_custom_call.1} parent=51 // pred_fallthru
          _
      $region52: #{tpu_custom_call.1} parent=39 // pred_fallthru
        _
      %p525 = scmp.lt.s32.totalorder %s21, 1
      %s526 = scalar_select %p525, %s21, 1
      %s527 = smul.addr %s526, 8
      %s528 = scalar_lea.vmem %s5, %s527
      // Predicated region
      $region57: #{tpu_custom_call.1} parent=39 // pred_check
        %p529 = pneg %p182
      $region58: #{tpu_custom_call.1} parent=39 // pred_check_branch
        %531 = sbr.rel (%p529) target = $region60
      $region59: #{tpu_custom_call.1} parent=39 // pred_region
        _
      $region60: #{tpu_custom_call.1} parent=39 // pred_fallthru
        _
    $region40: #{tpu_custom_call.1} parent=5 // pred_fallthru
      _
    %p532 = scmp.le.s32.totalorder 2, %s11
    // Predicated region
    $region61: #{tpu_custom_call.1} parent=5 // pred_check
      %p533 = pneg %p532
    $region62: #{tpu_custom_call.1} parent=5 // pred_check_branch
      %535 = sbr.rel (%p533) target = $region64
    $region63: #{tpu_custom_call.1} parent=5 // pred_region
      %s536 = ssub.s32 %s11, 2
      // Predicated region
      $region65: #{tpu_custom_call.1} parent=63 // pred_check
        %p537 = pneg %p188
      $region66: #{tpu_custom_call.1} parent=63 // pred_check_branch
        %539 = sbr.rel (%p537) target = $region68
      $region67: #{tpu_custom_call.1} parent=63 // pred_region
        %p540 = scmp.lt.s32.totalorder %s24, 1
        %s541 = scalar_select %p540, %s24, 1
        %s542 = smul.addr %s541, 8
        %s543 = scalar_lea.vmem %s5, %s542
      $region68: #{tpu_custom_call.1} parent=63 // pred_fallthru
        _
    $region64: #{tpu_custom_call.1} parent=5 // pred_fallthru
      _
  $region6: #{tpu_custom_call.1} parent=0 // loop_footer
    %s15 = sadd.s32 1, %s11
  $region7: #{tpu_custom_call.1} parent=0 // loop_footer_branch
    %10 = sbr.rel target = $region3
  $region8: #{tpu_custom_call.1} parent=0 // loop_exit
    _

</llo_original>
